<compile_context>
chip_gen: v7x
topology: tpu7x:2x2x1
jax: 0.10.0
libtpu: 0.0.40
codegen_flags: <defaults>
</compile_context>

<pallas_src>
import numpy as np
import jax
import jax.numpy as jnp
from jax.experimental import pallas as pl
from jax.experimental.pallas import tpu as pltpu


def dimension_split(d, m):
    reminder = d % m
    quotient = int(d / m)
    dims_width = [quotient + 1 if i < reminder else quotient for i in range(m)]
    ds = np.cumsum(dims_width)
    ds = np.insert(ds, 0, 0)
    return ds


def _round_up(v, mult):
    return ((v + mult - 1) // mult) * mult


def _pick_divisor_tile(dim, cap, align):
    """`dim` is a multiple of `align`.  Return the largest tile <= cap that is a
    multiple of `align` and divides `dim` exactly, so no extra padding beyond
    the (8,128) alignment is ever introduced.  `align` always works."""
    if dim <= cap:
        return dim
    t = (cap // align) * align
    while t > align:
        if dim % t == 0:
            return t
        t -= align
    return align


# ----------------------------- Pallas kernels ------------------------------
def _rq_fused_kernel(x_ref, w_ref, b_ref, o_ref):
    # Whole K resident in one block: a single MXU matmul per (i, j) tile with
    # the bias fused in.  bf16 inputs, f32 accumulation.
    o_ref[...] = (jnp.dot(x_ref[...], w_ref[...],
                          preferred_element_type=jnp.float32)
                  + b_ref[...])


def _make_tiled_k_kernel(tk, x_resident):
    def kernel(x_ref, w_ref, b_ref, o_ref):
        # NOTE: accumulating directly into o_ref is only valid because the K
        # axis is the LAST grid dimension and is marked "arbitrary", so the
        # output block stays VMEM-resident across all k steps.  Do not reorder
        # the grid or mark k "parallel".
        k = pl.program_id(2)

        @pl.when(k == 0)
        def _init():
            # Fold the pre-gathered, pre-summed bias into the accumulator init.
            o_ref[...] = jnp.broadcast_to(b_ref[...], o_ref.shape)

        if x_resident:
            xk = x_ref[:, pl.ds(pl.multiple_of(k * tk, 128), tk)]
        else:
            xk = x_ref[...]
        o_ref[...] += jnp.dot(xk, w_ref[...],
                              preferred_element_type=jnp.float32)

    return kernel


# ------------------------------- forward -----------------------------------
_VMEM_LIMIT = 32 * 1024 * 1024          # safe on v5e/v6e (128 MiB) and v7x (64 MiB)
_K_RESIDENT_MAX = 2048                  # whole-K-in-one-block threshold
_TM_CAP, _TN_CAP, _TK_CAP = 256, 1024, 1024
_X_RESIDENT_BYTES = 4 * 1024 * 1024     # per-buffer budget for resident x row-block


def rq_dense_forward(x, w_folded, b_folded, d_output):
    """out[:B, :d_output] = x @ w_folded + b_folded.

    w_folded : (Kp, Np) bf16 (or f32) — gathered, summed, 128-padded weights
               produced ONCE by fold_params (never re-padded per call).
    b_folded : (1, Np) f32 — gathered, summed, 128-padded bias.
    """
    B, K = x.shape
    Kp, Np = w_folded.shape
    assert Kp == _round_up(K, 128) and Np % 128 == 0 and Np >= d_output, \
        "w_folded/b_folded must come from fold_params (128-aligned padding)"
    dtype = w_folded.dtype

    # Tiles divide the (8,128)-aligned padded dims exactly -> no tile-size pad.
    Mp = _round_up(B, 8)
    tm = _pick_divisor_tile(Mp, _TM_CAP, 8)
    tn = _pick_divisor_tile(Np, _TN_CAP, 128)

    # v7x has 2 TensorCores: guarantee >= 2 parallel (i, j) blocks when possible
    # so dimension_semantics has something to shard.  Harmless on v5e/v6e.
    if (Mp // tm) * (Np // tn) == 1 and Np >= 256:
        tn = _pick_divisor_tile(Np, Np // 2, 128)

    # Pad/cast only x per call (weights/bias already padded in fold_params).
    xc = x.astype(dtype)
    if (Mp, Kp) != (B, K):
        xc = jnp.pad(xc, ((0, Mp - B), (0, Kp - K)))   # zero pad: exact

    if Kp <= _K_RESIDENT_MAX:
        # GEMV-like / moderate-K regime: no K grid axis, no k-loop RMW.
        out = pl.pallas_call(
            _rq_fused_kernel,
            out_shape=jax.ShapeDtypeStruct((Mp, Np), jnp.float32),
            grid_spec=pltpu.PrefetchScalarGridSpec(
                num_scalar_prefetch=0,
                grid=(Mp // tm, Np // tn),
                in_specs=[
                    pl.BlockSpec((tm, Kp), lambda i, j: (i, 0)),
                    pl.BlockSpec((Kp, tn), lambda i, j: (0, j)),
                    pl.BlockSpec((1, tn), lambda i, j: (0, j)),
                ],
                out_specs=pl.BlockSpec((tm, tn), lambda i, j: (i, j)),
            ),
            compiler_params=pltpu.CompilerParams(
                dimension_semantics=("parallel", "parallel"),
                vmem_limit_bytes=_VMEM_LIMIT),
        )(xc, w_folded, b_folded)
    else:
        tk = _pick_divisor_tile(Kp, _TK_CAP, 128)
        # Keep the whole-K x row-block VMEM-resident per i when it fits so x is
        # not re-streamed for every (j, k) pair.
        x_resident = tm * Kp * dtype.itemsize <= _X_RESIDENT_BYTES
        x_spec = (pl.BlockSpec((tm, Kp), lambda i, j, k: (i, 0)) if x_resident
                  else pl.BlockSpec((tm, tk), lambda i, j, k: (i, k)))
        out = pl.pallas_call(
            _make_tiled_k_kernel(tk, x_resident),
            out_shape=jax.ShapeDtypeStruct((Mp, Np), jnp.float32),
            grid_spec=pltpu.PrefetchScalarGridSpec(
                num_scalar_prefetch=0,
                grid=(Mp // tm, Np // tn, Kp // tk),
                in_specs=[
                    x_spec,
                    pl.BlockSpec((tk, tn), lambda i, j, k: (k, j)),
                    pl.BlockSpec((1, tn), lambda i, j, k: (0, j)),
                ],
                out_specs=pl.BlockSpec((tm, tn), lambda i, j, k: (i, j)),
            ),
            compiler_params=pltpu.CompilerParams(
                # K must stay last and "arbitrary": the output tile accumulates
                # in VMEM across the K steps (see kernel comment).
                dimension_semantics=("parallel", "parallel", "arbitrary"),
                vmem_limit_bytes=_VMEM_LIMIT),
        )(xc, w_folded, b_folded)

    return out[:B, :d_output]


# ------------------------- parameter construction --------------------------
def init_params(key, d_input, d_output, m, depth, ks):
    """Deterministic synthetic parameters matching the torch module shapes."""
    ds = dimension_split(d_input, m)
    params = []
    for _ in range(depth):
        for i in range(m):
            d_in = int(ds[i + 1] - ds[i])
            key, kw, kb, ki = jax.random.split(key, 4)
            bound = 1.0 / np.sqrt(d_in)
            W = jax.random.uniform(kw, (ks, d_in), jnp.float32, -bound, bound)
            b = jax.random.uniform(kb, (ks,), jnp.float32, -bound, bound)
            idx = jax.random.randint(ki, (d_output,), 0, ks)  # torch.randint
            params.append((int(ds[i]), int(ds[i + 1]), W, b, idx))
    return params


def fold_params(params, d_input, d_output, *, dtype=jnp.bfloat16):
    """Fold index_select + the depth*m segment summation into one weight/bias,
    pad ONCE to 128-aligned shapes and cast the weight to `dtype` (bf16).

    Exact because W[idx,:] / b[idx] are plain row-gathers, the per-depth chunks
    occupy disjoint input-column ranges, and the layer is purely linear (no
    per-segment nonlinearity), so segment outputs can be summed as weights
    before the matmul.  Padding lives here so the forward never re-copies W/b.
    """
    Kp = _round_up(d_input, 128)
    Np = _round_up(d_output, 128)
    W_sum = np.zeros((Kp, Np), np.float32)
    b_sum = np.zeros((1, Np), np.float32)
    for (lo, hi, W, b, idx) in params:
        Wn, bn, idxn = np.asarray(W), np.asarray(b), np.asarray(idx)
        W_sum[lo:hi, :d_output] += Wn[idxn, :].T          # (d_in, d_output)
        b_sum[0, :d_output] += bn[idxn]
    return jnp.asarray(W_sum, dtype=dtype), jnp.asarray(b_sum, jnp.float32)


def reference_forward(x, params):
    """Pure-JAX f32 mirror of the PyTorch forward (sum over depth*m segments)."""
    d_output = params[0][4].shape[0]
    out = jnp.zeros((x.shape[0], d_output), jnp.float32)
    for (lo, hi, W, b, idx) in params:
        y = x[:, lo:hi] @ W.T + b              # nn.Linear
        out = out + y[:, idx]                  # torch.index_select(dim=1)
    return out


if __name__ == "__main__":
    # Small shapes consistent with the module: RQDenseLayer(d_input=32,
    # d_output=16, m=2, depth=2, ks=64) applied to x of shape [B=8, 32].
    B, d_input, d_output, m, depth, ks = 8, 32, 16, 2, 2, 64

    key = jax.random.PRNGKey(0)
    key, kx = jax.random.split(key)
    x = jax.random.normal(kx, (B, d_input), jnp.float32)

    params = init_params(key, d_input, d_output, m, depth, ks)
    w_folded, b_folded = fold_params(params, d_input, d_output)  # bf16 W, f32 b

    out = rq_dense_forward(x, w_folded, b_folded, d_output)
    out = jax.block_until_ready(out)

    ref = reference_forward(x, params)
    assert out.shape == (B, d_output)
    # Tolerance widened vs the f32 version: weights/activations are bf16
    # (f32 MXU accumulation), so ~0.4% relative error is expected.
    np.testing.assert_allclose(np.asarray(out), np.asarray(ref),
                               rtol=2e-2, atol=2e-2)
    print("KERNEL_OK")
</pallas_src>

<mosaic_0001>
module attributes {stable_mosaic.version = 11 : i64} {
  func.func @_rq_fused_kernel(%arg0: i32, %arg1: i32, %arg2: memref<8x128xbf16, #tpu.memory_space<vmem>>, %arg3: memref<128x128xbf16, #tpu.memory_space<vmem>>, %arg4: memref<1x128xf32, #tpu.memory_space<vmem>>, %arg5: memref<8x128xf32, #tpu.memory_space<vmem>>) attributes {dimension_semantics = [#tpu.dimension_semantics<parallel>, #tpu.dimension_semantics<parallel>], iteration_bounds = array<i64: 1, 1>, scalar_prefetch = 0 : i64, scratch_operands = 0 : i64, tpu.core_type = #tpu.core_type<tc>, window_params = [{transform_indices = @transform_0, window_bounds = array<i64: 8, 128>}, {transform_indices = @transform_1, window_bounds = array<i64: 128, 128>}, {transform_indices = @transform_2, window_bounds = array<i64: 1, 128>}, {transform_indices = @transform_3, window_bounds = array<i64: 8, 128>}]} {
    %c0 = arith.constant 0 : index
    %c0_0 = arith.constant 0 : index
    %0 = vector.load %arg2[%c0, %c0_0] : memref<8x128xbf16, #tpu.memory_space<vmem>>, vector<8x128xbf16>
    %c0_1 = arith.constant 0 : index
    %c0_2 = arith.constant 0 : index
    %1 = vector.load %arg3[%c0_1, %c0_2] : memref<128x128xbf16, #tpu.memory_space<vmem>>, vector<128x128xbf16>
    %cst = arith.constant dense<0.000000e+00> : vector<8x128xf32>
    %2 = tpu.matmul %0, %1, %cst {dimension_numbers = #tpu.dot_dimension_numbers<[1], [0], [0], [1], [0, 0, 1, 1], [], []>} : vector<8x128xbf16>, vector<128x128xbf16>, vector<8x128xf32> -> vector<8x128xf32>
    %c0_3 = arith.constant 0 : index
    %c0_4 = arith.constant 0 : index
    %3 = vector.load %arg4[%c0_3, %c0_4] : memref<1x128xf32, #tpu.memory_space<vmem>>, vector<1x128xf32>
    %4 = vector.broadcast %3 : vector<1x128xf32> to vector<8x128xf32>
    %5 = arith.addf %2, %4 : vector<8x128xf32>
    %c0_5 = arith.constant 0 : index
    %c0_6 = arith.constant 0 : index
    %6 = vector.load %arg5[%c0_5, %c0_6] : memref<8x128xf32, #tpu.memory_space<vmem>>, vector<8x128xf32>
    tpu.vector_store %arg5[%c0_5, %c0_6], %5 {strides = array<i32>} : memref<8x128xf32, #tpu.memory_space<vmem>>, vector<8x128xf32>,
    return
  }
  func.func @transform_0(%arg0: i32, %arg1: i32) -> (i32, i32) {
    %c0_i32 = arith.constant 0 : i32
    %c0_i32_0 = arith.constant 0 : i32
    return %arg0, %c0_i32 : i32, i32
  }
  func.func @transform_1(%arg0: i32, %arg1: i32) -> (i32, i32) {
    %c0_i32 = arith.constant 0 : i32
    %c0_i32_0 = arith.constant 0 : i32
    return %c0_i32, %arg1 : i32, i32
  }
  func.func @transform_2(%arg0: i32, %arg1: i32) -> (i32, i32) {
    %c0_i32 = arith.constant 0 : i32
    %c0_i32_0 = arith.constant 0 : i32
    return %c0_i32, %arg1 : i32, i32
  }
  func.func @transform_3(%arg0: i32, %arg1: i32) -> (i32, i32) {
    %c0_i32 = arith.constant 0 : i32
    return %arg0, %arg1 : i32, i32
  }
}

</mosaic_0001>

<llo_original>
// kernel: tpu_custom_call.1
$region0: #{tpu_custom_call.1}
  #allocation0 [shape = 'u32[]', space=smem, size = 0x4, offset = 0x4, fixed_abs, tag = 'smem constant byte address 0x4 - core index']
  #allocation1 [shape = 'u32[144,128]{1,0:T(1,128)}', space=vmem, size = 0x12000, scoped, tag = 'internal scratch']
  %s0 = inlined_call_operand.hbm [shape: bf16[8,128], index: 0, kind: input, shape index: {}]
  %s1 = inlined_call_operand.hbm [shape: bf16[128,128], index: 1, kind: input, shape index: {}]
  %s2 = inlined_call_operand.vmem [shape: f32[1,128], index: 2, kind: input, shape index: {}]
  %s3 = inlined_call_operand.hbm [shape: f32[8,128], index: 3, kind: output, shape index: {}]
  %s4 = sld [smem:[#allocation0]]
  $region30: #{tpu_custom_call.1} parent=0
    _
  %s6 = ssub.s32 1, %s4
  %s7 = scalar_select 0, %s6, %s4
  $region1: #{tpu_custom_call.1} parent=0
    #allocation2 [shape = 'u8[2048]{0}', space=vmem, size = 0x800, scoped, tag = 'input window, operand 0, single buffered']
    #allocation3 [shape = 's32[1]{0}', space=sflag, size = 0x4, scoped, tag = 'scoped memory for tpu_custom_call.1']
    #allocation4 [shape = 's32[1]{0}', space=sflag, size = 0x4, scoped, tag = 'scoped memory for tpu_custom_call.1']
    #allocation5 [shape = 'u8[32768]{0}', space=vmem, size = 0x8000, scoped, tag = 'input window, operand 1, single buffered']
    #allocation6 [shape = 's32[1]{0}', space=sflag, size = 0x4, scoped, tag = 'scoped memory for tpu_custom_call.1']
    #allocation7 [shape = 'u8[4096]{0}', space=vmem, size = 0x1000, scoped, tag = 'output window, operand 0, single buffered']
    %8 = vsyncpa [#allocation3], 0
    %9 = vsyncpa [#allocation6], 0
    %10 = vsyncpa [#allocation4], 0
    // Predicated region
    $region2: #{tpu_custom_call.1} parent=1 // pred_check
      _
    $region3: #{tpu_custom_call.1} parent=1 // pred_check_branch
      %12 = sbr.rel (0) target = $region5
    $region4: #{tpu_custom_call.1} parent=1 // pred_region
      %s14 = ssub.s32 64, 64
      %15 = vsyncadd [#allocation3], %s14
      %s17 = sshll.u32 [#allocation2], 4
      %s18 = int_to_ptr.vmem [resolvable:$true] %s17
      %20 = dma.hbm_to_vmem [thread:$0]  %s0, 64, %s18, [#allocation3]
    $region5: #{tpu_custom_call.1} parent=1 // pred_fallthru
      _
    // Predicated region
    $region6: #{tpu_custom_call.1} parent=1 // pred_check
      _
    $region7: #{tpu_custom_call.1} parent=1 // pred_check_branch
      %22 = sbr.rel (0) target = $region9
    $region8: #{tpu_custom_call.1} parent=1 // pred_region
      %s24 = ssub.s32 1024, 1024
      %25 = vsyncadd [#allocation6], %s24
      %s26 = sshll.u32 [#allocation5], 4
      %s27 = int_to_ptr.vmem [resolvable:$true] %s26
      %32 = dma.hbm_to_vmem [thread:$0]  %s1, 1024, %s27, [#allocation6], 64, 64, 4
    $region9: #{tpu_custom_call.1} parent=1 // pred_fallthru
      _
    // Predicated region
    $region10: #{tpu_custom_call.1} parent=1 // pred_check
      _
    $region11: #{tpu_custom_call.1} parent=1 // pred_check_branch
      %34 = sbr.rel (0) target = $region13
    $region12: #{tpu_custom_call.1} parent=1 // pred_region
      _
    $region13: #{tpu_custom_call.1} parent=1 // pred_fallthru
      _
    // Predicated region
    $region14: #{tpu_custom_call.1} parent=1 // pred_check
      _
    $region15: #{tpu_custom_call.1} parent=1 // pred_check_branch
      %36 = sbr.rel (0) target = $region17
    $region16: #{tpu_custom_call.1} parent=1 // pred_region
      %37 = dma.done [#allocation3], 64
    $region17: #{tpu_custom_call.1} parent=1 // pred_fallthru
      _
    // Predicated region
    $region18: #{tpu_custom_call.1} parent=1 // pred_check
      _
    $region19: #{tpu_custom_call.1} parent=1 // pred_check_branch
      %39 = sbr.rel (0) target = $region21
    $region20: #{tpu_custom_call.1} parent=1 // pred_region
      %40 = dma.done [#allocation6], 1024
    $region21: #{tpu_custom_call.1} parent=1 // pred_fallthru
      _
    %v42 = vld [vmem:[#allocation2] sm:$0xf]
    %v43 = vld [vmem:[#allocation5] sm:$0xf]
    %v44 = vld [vmem:[#allocation5 + $0x4] sm:$0xf]
    %v45 = vld [vmem:[#allocation5 + $0x8] sm:$0xf]
    %v46 = vld [vmem:[#allocation5 + $0xc] sm:$0xf]
    %v47 = vld [vmem:[#allocation5 + $0x10] sm:$0xf]
    %v48 = vld [vmem:[#allocation5 + $0x14] sm:$0xf]
    %v49 = vld [vmem:[#allocation5 + $0x18] sm:$0xf]
    %v50 = vld [vmem:[#allocation5 + $0x1c] sm:$0xf]
    %v51 = vld [vmem:[#allocation5 + $0x20] sm:$0xf]
    %v52 = vld [vmem:[#allocation5 + $0x24] sm:$0xf]
    %v53 = vld [vmem:[#allocation5 + $0x28] sm:$0xf]
    %v54 = vld [vmem:[#allocation5 + $0x2c] sm:$0xf]
    %v55 = vld [vmem:[#allocation5 + $0x30] sm:$0xf]
    %v56 = vld [vmem:[#allocation5 + $0x34] sm:$0xf]
    %v57 = vld [vmem:[#allocation5 + $0x38] sm:$0xf]
    %v58 = vld [vmem:[#allocation5 + $0x3c] sm:$0xf]
    %v59 = vld [vmem:[%s2] sm:$0x1]
    %v61 = vlaneseq
    %v62 = vshrl.u32 %v61, 7
    %v63 = vsub.s32 0, %v62
    %v64 = vrot.slane %v59, %v63
    %v82 = vunpack.c.l.b16 %v43
    %v83 = vunpack.c.l.b16 %v44
    %v84 = vunpack.c.l.b16 %v45
    %v85 = vunpack.c.l.b16 %v46
    %v86 = vunpack.c.l.b16 %v47
    %v87 = vunpack.c.l.b16 %v48
    %v88 = vunpack.c.l.b16 %v49
    %v89 = vunpack.c.l.b16 %v50
    %v90 = vunpack.c.l.b16 %v51
    %v91 = vunpack.c.l.b16 %v52
    %v92 = vunpack.c.l.b16 %v53
    %v93 = vunpack.c.l.b16 %v54
    %v94 = vunpack.c.l.b16 %v55
    %v95 = vunpack.c.l.b16 %v56
    %v96 = vunpack.c.l.b16 %v57
    %v97 = vunpack.c.l.b16 %v58
    %v98 = vpack.c.b16 %v83, %v82
    %v99 = vpack.c.b16 %v85, %v84
    %v100 = vpack.c.b16 %v87, %v86
    %v101 = vpack.c.b16 %v89, %v88
    %v102 = vpack.c.b16 %v91, %v90
    %v103 = vpack.c.b16 %v93, %v92
    %v104 = vpack.c.b16 %v95, %v94
    %v105 = vpack.c.b16 %v97, %v96
    %114 = vmatprep.subr.bf16.mxu0 0
    %115 = vmatpush1.bf16.msra.mxu0 %v98
    %116 = vmatprep.subr.bf16.mxu0 0
    %117 = vmatpush1.bf16.msra.mxu0 %v99
    %118 = vmatprep.subr.bf16.mxu0 0
    %119 = vmatpush1.bf16.msra.mxu0 %v100
    %120 = vmatprep.subr.bf16.mxu0 0
    %121 = vmatpush1.bf16.msra.mxu0 %v101
    %122 = vmatprep.subr.bf16.mxu0 0
    %123 = vmatpush1.bf16.msra.mxu0 %v102
    %124 = vmatprep.subr.bf16.mxu0 0
    %125 = vmatpush1.bf16.msra.mxu0 %v103
    %126 = vmatprep.subr.bf16.mxu0 0
    %127 = vmatpush1.bf16.msra.mxu0 %v104
    %128 = vmatprep.subr.bf16.mxu0 0
    %129 = vmatpush1.bf16.msra.mxu0 %v105
    %130 = vmatprep.subr.bf16.mxu0 0
    %131 = vmatpush1.bf16.msra.mxu0 0
    %132 = vmatprep.subr.bf16.mxu0 0
    %133 = vmatpush1.bf16.msra.mxu0 0
    %134 = vmatprep.subr.bf16.mxu0 0
    %135 = vmatpush1.bf16.msra.mxu0 0
    %136 = vmatprep.subr.bf16.mxu0 0
    %137 = vmatpush1.bf16.msra.mxu0 0
    %138 = vmatprep.subr.bf16.mxu0 0
    %139 = vmatpush1.bf16.msra.mxu0 0
    %140 = vmatprep.subr.bf16.mxu0 0
    %141 = vmatpush1.bf16.msra.mxu0 0
    %142 = vmatprep.subr.bf16.mxu0 0
    %143 = vmatpush1.bf16.msra.mxu0 0
    %144 = vmatprep.subr.bf16.mxu0 0
    %145 = vmatpush1.bf16.msra.mxu0 0
    %146 = vmatprep.mubr.bf16.mxu0 0
    %147 = vmatmul.mubr.bf16.gmra.mrb[0].mxu0 %v42
    %v148 = vpop.f32.mrb[0].mxu0
    %v149 = vadd.f32 %v64, %v148
    %v150 = vpop.f32.mrb[0].mxu0
    %v151 = vpop.f32.mrb[0].mxu0
    %v152 = vpop.f32.mrb[0].mxu0
    %153 = vdwg.mxu0
    %154 = vst [vmem:[#allocation7] sm:$0xff] %v149
    // Predicated region
    $region22: #{tpu_custom_call.1} parent=1 // pred_check
      _
    $region23: #{tpu_custom_call.1} parent=1 // pred_check_branch
      %156 = sbr.rel (0) target = $region25
    $region24: #{tpu_custom_call.1} parent=1 // pred_region
      %s158 = ssub.s32 128, 128
      %159 = vsyncadd [#allocation4], %s158
      %s161 = sshll.u32 [#allocation7], 4
      %s162 = int_to_ptr.vmem [resolvable:$true] %s161
      %164 = dma.vmem_to_hbm [thread:$0]  %s162, 128, %s3, [#allocation4]
    $region25: #{tpu_custom_call.1} parent=1 // pred_fallthru
      _
    // Predicated region
    $region26: #{tpu_custom_call.1} parent=1 // pred_check
      _
    $region27: #{tpu_custom_call.1} parent=1 // pred_check_branch
      %166 = sbr.rel (0) target = $region29
    $region28: #{tpu_custom_call.1} parent=1 // pred_region
      %167 = dma.done [#allocation4], 128
    $region29: #{tpu_custom_call.1} parent=1 // pred_fallthru
      _
    %168 = vsyncpa [#allocation3], 1
    %169 = vsyncpa [#allocation6], 1
    %170 = vsyncpa [#allocation4], 1

</llo_original>
